<compile_context>
chip_gen: v7x
topology: tpu7x:2x2x1
jax: 0.10.0
libtpu: 0.0.40
codegen_flags: <defaults>
</compile_context>

<pallas_src>
import jax
import jax.numpy as jnp
from jax.experimental import pallas as pl
from jax.experimental.pallas import tpu as pltpu


_TARGET_BLOCK_BYTES = 2 << 20  # ~2 MiB per block (in+out double-buffered
                               # => ~8 MiB of VMEM, safe on v5e/v6e/v7x).


def _choose_blocks(N, C, HW, itemsize):
    """Pick (n_blk, c_blk) so one block is roughly _TARGET_BLOCK_BYTES."""
    row_bytes = HW * itemsize                    # one (1, 1, HW) row
    budget_rows = max(1, _TARGET_BLOCK_BYTES // row_bytes)

    # Channel block: multiple of 8 (sublane) dividing C, or all of C.
    if budget_rows >= C:
        c_blk = C
    else:
        c_blk = max(8, (budget_rows // 8) * 8)
        while c_blk > 8 and C % c_blk != 0:
            c_blk -= 8
        if C % c_blk != 0:
            c_blk = C                            # fall back to a full-C block
    c_blk = min(c_blk, C)

    # Batch several images per block when one full-C slab is still small
    # (late ResNet layers, e.g. 512 x 7 x 7 f32 = 100 KB).
    n_blk = 1
    if c_blk == C:
        n_blk = max(1, min(N, budget_rows // C))
        while N % n_blk != 0:
            n_blk -= 1
    return n_blk, c_blk


def _learnable_bias_kernel(x_ref, b_ref, o_ref):
    # x_ref: (n_blk, c_blk, HW) tile; b_ref: (1, c_blk, 1) sublane vector.
    # jnp broadcasting reproduces bias.expand_as(x) + add on the VPU; the
    # (c_blk, 1) bias broadcasts cheaply along the 128-lane axis.
    o_ref[...] = x_ref[...] + b_ref[...]


def learnable_bias(x: jax.Array, bias: jax.Array, *, in_place: bool = False) -> jax.Array:
    """out = x + bias broadcast over (N, H, W).  x: (N, C, H, W), bias: (1, C, 1, 1)."""
    assert x.ndim == 4 and bias.shape == (1, x.shape[1], 1, 1)
    N, C, H, W = x.shape
    HW = H * W
    bias = bias.astype(x.dtype)

    # Lane-dense layout: put H*W on the lane axis.
    x_flat = x.reshape(N, C, HW)
    b_flat = bias.reshape(1, C, 1)

    n_blk, c_blk = _choose_blocks(N, C, HW, x.dtype.itemsize)
    grid = (N // n_blk, C // c_blk)

    out_flat = pl.pallas_call(
        _learnable_bias_kernel,
        out_shape=jax.ShapeDtypeStruct((N, C, HW), x.dtype),
        grid_spec=pltpu.PrefetchScalarGridSpec(
            num_scalar_prefetch=0,
            grid=grid,
            in_specs=[
                pl.BlockSpec((n_blk, c_blk, HW), lambda n, c: (n, c, 0)),
                pl.BlockSpec((1, c_blk, 1), lambda n, c: (0, c, 0)),
            ],
            out_specs=pl.BlockSpec((n_blk, c_blk, HW), lambda n, c: (n, c, 0)),
        ),
        compiler_params=pltpu.CompilerParams(
            # Both axes are independent: lets v7x's two TensorCores split the
            # grid; no effect on single-TC v5e/v6e.
            dimension_semantics=("parallel", "parallel"),
        ),
        # Optionally overwrite x in place (caller promises x is dead after
        # the add, as is typical for the bias adds inside BiReal blocks).
        input_output_aliases={0: 0} if in_place else {},
    )(x_flat, b_flat)

    return out_flat.reshape(N, C, H, W)


if __name__ == "__main__":
    key = jax.random.PRNGKey(0)
    N, C, H, W = 2, 4, 16, 16

    x = jax.random.normal(key, (N, C, H, W), dtype=jnp.float32)

    # nn.Parameter(torch.zeros(1, out_chn, 1, 1)) -> deterministic zeros init.
    # Also use a small nonzero deterministic bias so the broadcast path is
    # actually exercised in the correctness check.
    bias_zeros = jnp.zeros((1, C, 1, 1), dtype=jnp.float32)
    bias_nonzero = jnp.arange(C, dtype=jnp.float32).reshape(1, C, 1, 1) * 0.1

    for bias in (bias_zeros, bias_nonzero):
        ref = x + bias  # broadcast reference
        out = learnable_bias(x, bias)
        jax.block_until_ready(out)
        assert out.shape == x.shape and out.dtype == x.dtype
        assert jnp.allclose(out, ref, atol=1e-6, rtol=1e-6)

    # In-place variant (x not needed afterwards).
    ref = x + bias_nonzero
    out = learnable_bias(x, bias_nonzero, in_place=True)
    jax.block_until_ready(out)
    assert jnp.allclose(out, ref, atol=1e-6, rtol=1e-6)

    print("KERNEL_OK")
</pallas_src>

<mosaic_0001>
module attributes {stable_mosaic.version = 11 : i64} {
  func.func @_learnable_bias_kernel(%arg0: i32, %arg1: i32, %arg2: memref<2x4x256xf32, #tpu.memory_space<vmem>>, %arg3: memref<1x4x1xf32, #tpu.memory_space<vmem>>, %arg4: memref<2x4x256xf32, #tpu.memory_space<vmem>>) attributes {dimension_semantics = [#tpu.dimension_semantics<parallel>, #tpu.dimension_semantics<parallel>], iteration_bounds = array<i64: 1, 1>, scalar_prefetch = 0 : i64, scratch_operands = 0 : i64, tpu.core_type = #tpu.core_type<tc>, window_params = [{transform_indices = @transform_0, window_bounds = array<i64: 2, 4, 256>}, {transform_indices = @transform_1, window_bounds = array<i64: 1, 4, 1>}, {transform_indices = @transform_2, window_bounds = array<i64: 2, 4, 256>}]} {
    %c0 = arith.constant 0 : index
    %c0_0 = arith.constant 0 : index
    %c0_1 = arith.constant 0 : index
    %0 = vector.load %arg2[%c0, %c0_0, %c0_1] : memref<2x4x256xf32, #tpu.memory_space<vmem>>, vector<2x4x256xf32>
    %c0_2 = arith.constant 0 : index
    %c0_3 = arith.constant 0 : index
    %c0_4 = arith.constant 0 : index
    %1 = vector.load %arg3[%c0_2, %c0_3, %c0_4] : memref<1x4x1xf32, #tpu.memory_space<vmem>>, vector<1x4x1xf32>
    %2 = vector.broadcast %1 : vector<1x4x1xf32> to vector<2x4x256xf32>
    %3 = arith.addf %0, %2 : vector<2x4x256xf32>
    %c0_5 = arith.constant 0 : index
    %c0_6 = arith.constant 0 : index
    %c0_7 = arith.constant 0 : index
    %4 = vector.load %arg4[%c0_5, %c0_6, %c0_7] : memref<2x4x256xf32, #tpu.memory_space<vmem>>, vector<2x4x256xf32>
    tpu.vector_store %arg4[%c0_5, %c0_6, %c0_7], %3 {strides = array<i32>} : memref<2x4x256xf32, #tpu.memory_space<vmem>>, vector<2x4x256xf32>,
    return
  }
  func.func @transform_0(%arg0: i32, %arg1: i32) -> (i32, i32, i32) {
    %c0_i32 = arith.constant 0 : i32
    %c0_i32_0 = arith.constant 0 : i32
    return %arg0, %arg1, %c0_i32 : i32, i32, i32
  }
  func.func @transform_1(%arg0: i32, %arg1: i32) -> (i32, i32, i32) {
    %c0_i32 = arith.constant 0 : i32
    %c0_i32_0 = arith.constant 0 : i32
    %c0_i32_1 = arith.constant 0 : i32
    return %c0_i32, %arg1, %c0_i32_0 : i32, i32, i32
  }
  func.func @transform_2(%arg0: i32, %arg1: i32) -> (i32, i32, i32) {
    %c0_i32 = arith.constant 0 : i32
    %c0_i32_0 = arith.constant 0 : i32
    return %arg0, %arg1, %c0_i32 : i32, i32, i32
  }
}

</mosaic_0001>

<llo_original>
// kernel: tpu_custom_call.1
$region0: #{tpu_custom_call.1}
  #allocation0 [shape = 'u32[]', space=smem, size = 0x4, offset = 0x4, fixed_abs, tag = 'smem constant byte address 0x4 - core index']
  #allocation1 [shape = 'u32[144,128]{1,0:T(1,128)}', space=vmem, size = 0x12000, scoped, tag = 'internal scratch']
  %s0 = inlined_call_operand.hbm [shape: f32[2,4,256], index: 0, kind: input, shape index: {}]
  %s1 = inlined_call_operand.vmem [shape: f32[1,4,1], index: 1, kind: input, shape index: {}]
  %s2 = inlined_call_operand.hbm [shape: f32[2,4,256], index: 2, kind: output, shape index: {}]
  %s3 = sld [smem:[#allocation0]]
  $region22: #{tpu_custom_call.1} parent=0
    _
  %s5 = ssub.s32 1, %s3
  %s6 = scalar_select 0, %s5, %s3
  $region1: #{tpu_custom_call.1} parent=0
    #allocation2 [shape = 'u8[8192]{0}', space=vmem, size = 0x2000, scoped, tag = 'input window, operand 0, single buffered']
    #allocation3 [shape = 's32[1]{0}', space=sflag, size = 0x4, scoped, tag = 'scoped memory for tpu_custom_call.1']
    #allocation4 [shape = 's32[1]{0}', space=sflag, size = 0x4, scoped, tag = 'scoped memory for tpu_custom_call.1']
    #allocation5 [shape = 'u8[8192]{0}', space=vmem, size = 0x2000, scoped, tag = 'output window, operand 0, single buffered']
    %7 = vsyncpa [#allocation3], 0
    %8 = vsyncpa [#allocation4], 0
    // Predicated region
    $region2: #{tpu_custom_call.1} parent=1 // pred_check
      _
    $region3: #{tpu_custom_call.1} parent=1 // pred_check_branch
      %10 = sbr.rel (0) target = $region5
    $region4: #{tpu_custom_call.1} parent=1 // pred_region
      %s12 = ssub.s32 256, 256
      %13 = vsyncadd [#allocation3], %s12
      %s14 = sshll.u32 [#allocation2], 4
      %s15 = int_to_ptr.vmem [resolvable:$true] %s14
      %20 = dma.hbm_to_vmem [thread:$0]  %s0, 256, %s15, [#allocation3], 128, 128, 8
    $region5: #{tpu_custom_call.1} parent=1 // pred_fallthru
      _
    // Predicated region
    $region6: #{tpu_custom_call.1} parent=1 // pred_check
      _
    $region7: #{tpu_custom_call.1} parent=1 // pred_check_branch
      %22 = sbr.rel (0) target = $region9
    $region8: #{tpu_custom_call.1} parent=1 // pred_region
      _
    $region9: #{tpu_custom_call.1} parent=1 // pred_fallthru
      _
    // Predicated region
    $region10: #{tpu_custom_call.1} parent=1 // pred_check
      _
    $region11: #{tpu_custom_call.1} parent=1 // pred_check_branch
      %24 = sbr.rel (0) target = $region13
    $region12: #{tpu_custom_call.1} parent=1 // pred_region
      %25 = dma.done [#allocation3], 256
    $region13: #{tpu_custom_call.1} parent=1 // pred_fallthru
      _
    %v26 = vld [vmem:[#allocation2] sm:$0xff]
    %v27 = vld [vmem:[#allocation2 + $0x8] sm:$0xff]
    %v28 = vld [vmem:[%s1] sm:$0xf]
    %30 = vset.pattern.permute.xlu0 0
    %31 = vperm.xlu0 %30, %v28
    %v32 = vpop.permute.xlu0 %31
    %v34 = vunpack.c.l.s4 839922192
    %v35 = vunpack.c.0.s8 %v34
    %v36 = vlaneseq
    %v37 = vshrl.u32 %v36, 7
    %v38 = vsub.s32 %v35, %v37
    %v39 = vrot.slane %v32, %v38
    %v41 = vadd.f32 %v26, %v39
    %v42 = vadd.f32 %v27, %v39
    %43 = vst [vmem:[#allocation5] sm:$0xff] %v41
    %44 = vst [vmem:[#allocation5 + $0x8] sm:$0xff] %v42
    // Predicated region
    $region14: #{tpu_custom_call.1} parent=1 // pred_check
      _
    $region15: #{tpu_custom_call.1} parent=1 // pred_check_branch
      %46 = sbr.rel (0) target = $region17
    $region16: #{tpu_custom_call.1} parent=1 // pred_region
      %s48 = ssub.s32 256, 256
      %49 = vsyncadd [#allocation4], %s48
      %s50 = sshll.u32 [#allocation5], 4
      %s51 = int_to_ptr.vmem [resolvable:$true] %s50
      %56 = dma.vmem_to_hbm [thread:$0]  %s51, 256, %s2, [#allocation4], 128, 128, 8
    $region17: #{tpu_custom_call.1} parent=1 // pred_fallthru
      _
    // Predicated region
    $region18: #{tpu_custom_call.1} parent=1 // pred_check
      _
    $region19: #{tpu_custom_call.1} parent=1 // pred_check_branch
      %58 = sbr.rel (0) target = $region21
    $region20: #{tpu_custom_call.1} parent=1 // pred_region
      %59 = dma.done [#allocation4], 256
    $region21: #{tpu_custom_call.1} parent=1 // pred_fallthru
      _
    %60 = vsyncpa [#allocation3], 1
    %61 = vsyncpa [#allocation4], 1

</llo_original>
